<compile_context>
chip_gen: v5e
topology: v5e:2x2
jax: 0.10.0
libtpu: 0.0.40
codegen_flags: <defaults>
</compile_context>

<pallas_src>
import functools

import jax
import jax.numpy as jnp
from jax import lax
from jax.experimental import pallas as pl
from jax.experimental.pallas import tpu as pltpu


def _dot_t(a, b):
    """a @ b.T, contracting the shared last dim (PyTorch nn.Linear layout)."""
    return lax.dot_general(
        a, b,
        dimension_numbers=(((1,), (1,)), ((), ())),
        preferred_element_type=jnp.float32,
    )


def ssm_black_kernel(
    x0_ref, a_w_ref, a_s_ref, b_w_ref, e_w_ref, h1m_ref, h1d_ref, h2_ref,
    mflow_ref, dt_ref, d_ref,          # streamed (Tb*B, feat) blocks
    x_out_ref,                         # streamed (Tb*B, nx) output block
    x_state, a_eff,                    # persistent VMEM scratch
    *, time_block, batch):
    tb = pl.program_id(0)

    @pl.when(tb == 0)
    def _init():
        # Effective A matrix, built ONCE per call and cached for the rollout.
        # Kept un-transposed (nx_out, nx_in) so the recurrence matmul below
        # contracts on the last dim (x @ a_eff.T == x @ W_eff).
        # EXACT softmax normalization: an approximate reciprocal here would be
        # baked into W_eff and compound over every recurrence step.
        s_clamped = 1.0 - 0.1 * jax.nn.sigmoid(a_s_ref[...])        # (nx, nx)
        w = a_w_ref[...]
        w_exp = jnp.exp(w - jnp.max(w, axis=1, keepdims=True))
        a_eff[...] = s_clamped * (w_exp / jnp.sum(w_exp, axis=1, keepdims=True))
        x_state[...] = x0_ref[...]

    # ---- Non-recurrent part, batched over ALL Tb*B rows of this block ----
    # u = relu(hf2(relu(hf1(cat([m_flow, dT], dim=1)))))
    # (hf1 weight pre-split by columns in the wrapper -> no lane concat here)
    h1 = jnp.maximum(
        _dot_t(mflow_ref[...], h1m_ref[...]) + _dot_t(dt_ref[...], h1d_ref[...]),
        0.0)
    u = jnp.maximum(_dot_t(h1, h2_ref[...]), 0.0)                    # (Tb*B, nu)
    # c_t = B(u_t) + E(d_t), hoisted off the serial critical path.
    c = _dot_t(u, b_w_ref[...]) + _dot_t(d_ref[...], e_w_ref[...])   # (Tb*B, nx)

    # ---- Serial recurrence: one small matmul + add per timestep ----
    w_eff_t = a_eff[...]                 # hoist the scratch load out of the loop
    x = x_state[...]
    for t in range(time_block):          # static unroll; Tb is small
        lo = t * batch
        x = _dot_t(x, w_eff_t) + c[lo:lo + batch, :]
        x_out_ref[lo:lo + batch, :] = x
    x_state[...] = x                     # carry state across time blocks


@functools.partial(jax.jit, static_argnames=("time_block",))
def ssm_black_forward(x0, M_flow, DT, D, a_w, a_s, b_w, e_w, h1_w, h2_w,
                      *, time_block=None):
    """Full SSM_black forward.

    x0: (B, nx); M_flow: (T, B, n_m); DT: (T, B, n_dT); D: (T, B, nd)
    a_w, a_s: (nx, nx); b_w: (nx, nu); e_w: (nx, nd)
    h1_w: (n_hidden, n_m + n_dT); h2_w: (nu, n_hidden)
    Returns (X: (T, B, nx), Y: (T, B)).
    """
    T, B, n_m = M_flow.shape
    n_dT = DT.shape[-1]
    nd = D.shape[-1]
    nx = a_w.shape[0]
    n_hidden = h1_w.shape[0]
    nu = h2_w.shape[0]
    assert x0.shape == (B, nx)
    assert a_w.shape == (nx, nx) and a_s.shape == (nx, nx)
    assert b_w.shape == (nx, nu) and e_w.shape == (nx, nd)
    assert h1_w.shape == (n_hidden, n_m + n_dT) and h2_w.shape == (nu, n_hidden)

    # Whole rollout per grid step at these (small) shapes; for long T pick a
    # divisor Tb and the same kernel streams time blocks sequentially.
    Tb = T if time_block is None else time_block
    assert T % Tb == 0, "time_block must divide T"
    num_blocks = T // Tb

    # 2-D, matmul-ready views of the streamed inputs: (T*B, feat).
    M2 = M_flow.reshape(T * B, n_m)
    DT2 = DT.reshape(T * B, n_dT)
    D2 = D.reshape(T * B, nd)

    # Split hf1's weight by input columns so the kernel never concatenates
    # along the lane axis.
    h1m_w = h1_w[:, :n_m]
    h1d_w = h1_w[:, n_m:]

    fixed = lambda i: (0, 0)
    step = lambda i: (i, 0)

    grid_spec = pltpu.PrefetchScalarGridSpec(
        num_scalar_prefetch=0,
        grid=(num_blocks,),
        in_specs=[
            pl.BlockSpec((B, nx), fixed),             # x0
            pl.BlockSpec((nx, nx), fixed),            # A.weight
            pl.BlockSpec((nx, nx), fixed),            # A.scalar
            pl.BlockSpec((nx, nu), fixed),            # B.weight
            pl.BlockSpec((nx, nd), fixed),            # E.weight
            pl.BlockSpec((n_hidden, n_m), fixed),     # hf1.weight[:, :n_m]
            pl.BlockSpec((n_hidden, n_dT), fixed),    # hf1.weight[:, n_m:]
            pl.BlockSpec((nu, n_hidden), fixed),      # hf2.weight
            pl.BlockSpec((Tb * B, n_m), step),        # M_flow block
            pl.BlockSpec((Tb * B, n_dT), step),       # DT block
            pl.BlockSpec((Tb * B, nd), step),         # D block
        ],
        out_specs=pl.BlockSpec((Tb * B, nx), step),   # X block
        scratch_shapes=[
            pltpu.VMEM((B, nx), jnp.float32),         # recurrent state x
            pltpu.VMEM((nx, nx), jnp.float32),        # cached effective A
        ],
    )

    kernel = functools.partial(ssm_black_kernel, time_block=Tb, batch=B)

    X_flat = pl.pallas_call(
        kernel,
        out_shape=jax.ShapeDtypeStruct((T * B, nx), jnp.float32),
        grid_spec=grid_spec,
        compiler_params=pltpu.CompilerParams(
            # Time is a true recurrence -> sequential grid axis.
            dimension_semantics=("arbitrary",),
        ),
    )(x0, a_w, a_s, b_w, e_w, h1m_w, h1d_w, h2_w, M2, DT2, D2)

    X = X_flat.reshape(T, B, nx)
    Y = X[:, :, -1]   # torch: x[:, -1] per step, stacked -> (T, B)
    return X, Y


def ssm_black_reference(x0, M_flow, DT, D, a_w, a_s, b_w, e_w, h1_w, h2_w):
    """Pure-JAX mirror of the PyTorch module (full f32 matmul precision)."""
    hp = jax.lax.Precision.HIGHEST
    mm = lambda a, b: jnp.matmul(a, b, precision=hp)
    s_clamped = 1.0 - 0.1 * jax.nn.sigmoid(a_s)
    w_eff = (s_clamped * jax.nn.softmax(a_w, axis=1)).T
    x = x0
    X = []
    for t in range(M_flow.shape[0]):
        z = jnp.concatenate([M_flow[t], DT[t]], axis=1)
        u = jax.nn.relu(mm(jax.nn.relu(mm(z, h1_w.T)), h2_w.T))
        x = mm(x, w_eff) + mm(u, b_w.T) + mm(D[t], e_w.T)
        X.append(x)
    X = jnp.stack(X)
    return X, X[:, :, -1]


if __name__ == "__main__":
    key = jax.random.PRNGKey(0)
    keys = jax.random.split(key, 10)

    # Small shapes consistent with the module's forward.
    T, B = 8, 8
    nx, nu, nd = 32, 16, 8
    n_m, n_dT, n_hidden = 8, 8, 32

    def linear_init(k, out_f, in_f):
        bound = float(in_f) ** -0.5          # nn.Linear default init range
        return jax.random.uniform(k, (out_f, in_f), jnp.float32, -bound, bound)

    # ConstrainedLinear params: torch.rand -> U[0, 1)
    a_w = jax.random.uniform(keys[0], (nx, nx), jnp.float32)
    a_s = jax.random.uniform(keys[1], (nx, nx), jnp.float32)
    # nn.Linear(bias=False) weights
    b_w = linear_init(keys[2], nx, nu)
    e_w = linear_init(keys[3], nx, nd)
    h1_w = linear_init(keys[4], n_hidden, n_m + n_dT)
    h2_w = linear_init(keys[5], nu, n_hidden)

    x0 = jax.random.uniform(keys[6], (B, nx), jnp.float32)
    M_flow = jax.random.uniform(keys[7], (T, B, n_m), jnp.float32)
    DT = jax.random.uniform(keys[8], (T, B, n_dT), jnp.float32)
    D = jax.random.uniform(keys[9], (T, B, nd), jnp.float32)

    X, Y = ssm_black_forward(x0, M_flow, DT, D, a_w, a_s, b_w, e_w, h1_w, h2_w)
    X = jax.block_until_ready(X)
    Y = jax.block_until_ready(Y)

    X_ref, Y_ref = ssm_black_reference(x0, M_flow, DT, D, a_w, a_s, b_w, e_w,
                                       h1_w, h2_w)

    assert X.shape == (T, B, nx) and Y.shape == (T, B)
    assert jnp.allclose(X, X_ref, atol=5e-4, rtol=5e-4), (
        f"max abs err X = {jnp.max(jnp.abs(X - X_ref))}")
    assert jnp.allclose(Y, Y_ref, atol=5e-4, rtol=5e-4), (
        f"max abs err Y = {jnp.max(jnp.abs(Y - Y_ref))}")
    print("KERNEL_OK")
</pallas_src>

<mosaic_0001>
module attributes {stable_mosaic.version = 11 : i64} {
  func.func @ssm_black_kernel(%arg0: i32, %arg1: memref<8x32xf32, #tpu.memory_space<vmem>>, %arg2: memref<32x32xf32, #tpu.memory_space<vmem>>, %arg3: memref<32x32xf32, #tpu.memory_space<vmem>>, %arg4: memref<32x16xf32, #tpu.memory_space<vmem>>, %arg5: memref<32x8xf32, #tpu.memory_space<vmem>>, %arg6: memref<32x8xf32, #tpu.memory_space<vmem>>, %arg7: memref<32x8xf32, #tpu.memory_space<vmem>>, %arg8: memref<16x32xf32, #tpu.memory_space<vmem>>, %arg9: memref<64x8xf32, #tpu.memory_space<vmem>>, %arg10: memref<64x8xf32, #tpu.memory_space<vmem>>, %arg11: memref<64x8xf32, #tpu.memory_space<vmem>>, %arg12: memref<64x32xf32, #tpu.memory_space<vmem>>, %arg13: memref<8x32xf32, #tpu.memory_space<vmem>>, %arg14: memref<32x32xf32, #tpu.memory_space<vmem>>) attributes {dimension_semantics = [#tpu.dimension_semantics<arbitrary>], iteration_bounds = array<i64: 1>, scalar_prefetch = 0 : i64, scratch_operands = 2 : i64, tpu.core_type = #tpu.core_type<tc>, window_params = [{pipeline_mode = #tpu.pipeline_mode<synchronous>, transform_indices = @transform_0, window_bounds = array<i64: 8, 32>}, {pipeline_mode = #tpu.pipeline_mode<synchronous>, transform_indices = @transform_1, window_bounds = array<i64: 32, 32>}, {pipeline_mode = #tpu.pipeline_mode<synchronous>, transform_indices = @transform_2, window_bounds = array<i64: 32, 32>}, {pipeline_mode = #tpu.pipeline_mode<synchronous>, transform_indices = @transform_3, window_bounds = array<i64: 32, 16>}, {pipeline_mode = #tpu.pipeline_mode<synchronous>, transform_indices = @transform_4, window_bounds = array<i64: 32, 8>}, {pipeline_mode = #tpu.pipeline_mode<synchronous>, transform_indices = @transform_5, window_bounds = array<i64: 32, 8>}, {pipeline_mode = #tpu.pipeline_mode<synchronous>, transform_indices = @transform_6, window_bounds = array<i64: 32, 8>}, {pipeline_mode = #tpu.pipeline_mode<synchronous>, transform_indices = @transform_7, window_bounds = array<i64: 16, 32>}, {transform_indices = @transform_8, window_bounds = array<i64: 64, 8>}, {transform_indices = @transform_9, window_bounds = array<i64: 64, 8>}, {transform_indices = @transform_10, window_bounds = array<i64: 64, 8>}, {transform_indices = @transform_11, window_bounds = array<i64: 64, 32>}]} {
    %c0_i32 = arith.constant 0 : i32
    %0 = arith.cmpi eq, %arg0, %c0_i32 : i32
    %1 = arith.extui %0 : i1 to i32
    %c0_i32_0 = arith.constant 0 : i32
    %2 = arith.cmpi ne, %1, %c0_i32_0 : i32
    scf.if %2 {
      %c0_45 = arith.constant 0 : index
      %c0_46 = arith.constant 0 : index
      %57 = vector.load %arg3[%c0_45, %c0_46] : memref<32x32xf32, #tpu.memory_space<vmem>>, vector<32x32xf32>
      %58 = arith.negf %57 : vector<32x32xf32>
      %59 = math.exp %58 : vector<32x32xf32>
      %cst_47 = arith.constant 1.000000e+00 : f32
      %60 = vector.broadcast %cst_47 : f32 to vector<32x32xf32>
      %61 = arith.addf %60, %59 : vector<32x32xf32>
      %62 = arith.divf %60, %61 : vector<32x32xf32>
      %cst_48 = arith.constant 1.000000e-01 : f32
      %63 = vector.broadcast %cst_48 : f32 to vector<32x32xf32>
      %64 = arith.mulf %63, %62 : vector<32x32xf32>
      %cst_49 = arith.constant 1.000000e+00 : f32
      %65 = vector.broadcast %cst_49 : f32 to vector<32x32xf32>
      %66 = arith.subf %65, %64 : vector<32x32xf32>
      %c0_50 = arith.constant 0 : index
      %c0_51 = arith.constant 0 : index
      %67 = vector.load %arg2[%c0_50, %c0_51] : memref<32x32xf32, #tpu.memory_space<vmem>>, vector<32x32xf32>
      %cst_52 = arith.constant dense<0xFF800000> : vector<32xf32>
      %68 = vector.multi_reduction <maximumf>, %67, %cst_52 [1] : vector<32x32xf32> to vector<32xf32>
      %69 = vector.shape_cast %68 : vector<32xf32> to vector<32x1xf32>
      %70 = vector.broadcast %69 : vector<32x1xf32> to vector<32x32xf32>
      %71 = arith.subf %67, %70 : vector<32x32xf32>
      %72 = math.exp %71 : vector<32x32xf32>
      %cst_53 = arith.constant dense<0.000000e+00> : vector<32xf32>
      %73 = vector.multi_reduction <add>, %72, %cst_53 [1] : vector<32x32xf32> to vector<32xf32>
      %74 = vector.shape_cast %73 : vector<32xf32> to vector<32x1xf32>
      %75 = vector.broadcast %74 : vector<32x1xf32> to vector<32x32xf32>
      %76 = arith.divf %72, %75 : vector<32x32xf32>
      %77 = arith.mulf %66, %76 : vector<32x32xf32>
      %c0_54 = arith.constant 0 : index
      %c0_55 = arith.constant 0 : index
      %78 = vector.load %arg14[%c0_54, %c0_55] : memref<32x32xf32, #tpu.memory_space<vmem>>, vector<32x32xf32>
      tpu.vector_store %arg14[%c0_54, %c0_55], %77 {strides = array<i32>} : memref<32x32xf32, #tpu.memory_space<vmem>>, vector<32x32xf32>,
      %c0_56 = arith.constant 0 : index
      %c0_57 = arith.constant 0 : index
      %79 = vector.load %arg1[%c0_56, %c0_57] : memref<8x32xf32, #tpu.memory_space<vmem>>, vector<8x32xf32>
      %c0_58 = arith.constant 0 : index
      %c0_59 = arith.constant 0 : index
      %80 = vector.load %arg13[%c0_58, %c0_59] : memref<8x32xf32, #tpu.memory_space<vmem>>, vector<8x32xf32>
      tpu.vector_store %arg13[%c0_58, %c0_59], %79 {strides = array<i32>} : memref<8x32xf32, #tpu.memory_space<vmem>>, vector<8x32xf32>,
    } else {
    }
    %c0 = arith.constant 0 : index
    %c0_1 = arith.constant 0 : index
    %3 = vector.load %arg9[%c0, %c0_1] : memref<64x8xf32, #tpu.memory_space<vmem>>, vector<64x8xf32>
    %c0_2 = arith.constant 0 : index
    %c0_3 = arith.constant 0 : index
    %4 = vector.load %arg6[%c0_2, %c0_3] : memref<32x8xf32, #tpu.memory_space<vmem>>, vector<32x8xf32>
    %cst = arith.constant dense<0.000000e+00> : vector<64x32xf32>
    %5 = tpu.matmul %3, %4, %cst {dimension_numbers = #tpu.dot_dimension_numbers<[1], [1], [0], [0], [0, 0, 1, 0], [], []>} : vector<64x8xf32>, vector<32x8xf32>, vector<64x32xf32> -> vector<64x32xf32>
    %c0_4 = arith.constant 0 : index
    %c0_5 = arith.constant 0 : index
    %6 = vector.load %arg10[%c0_4, %c0_5] : memref<64x8xf32, #tpu.memory_space<vmem>>, vector<64x8xf32>
    %c0_6 = arith.constant 0 : index
    %c0_7 = arith.constant 0 : index
    %7 = vector.load %arg7[%c0_6, %c0_7] : memref<32x8xf32, #tpu.memory_space<vmem>>, vector<32x8xf32>
    %cst_8 = arith.constant dense<0.000000e+00> : vector<64x32xf32>
    %8 = tpu.matmul %6, %7, %cst_8 {dimension_numbers = #tpu.dot_dimension_numbers<[1], [1], [0], [0], [0, 0, 1, 0], [], []>} : vector<64x8xf32>, vector<32x8xf32>, vector<64x32xf32> -> vector<64x32xf32>
    %9 = arith.addf %5, %8 : vector<64x32xf32>
    %cst_9 = arith.constant 0.000000e+00 : f32
    %10 = vector.broadcast %cst_9 : f32 to vector<64x32xf32>
    %11 = arith.maximumf %9, %10 : vector<64x32xf32>
    %c0_10 = arith.constant 0 : index
    %c0_11 = arith.constant 0 : index
    %12 = vector.load %arg8[%c0_10, %c0_11] : memref<16x32xf32, #tpu.memory_space<vmem>>, vector<16x32xf32>
    %cst_12 = arith.constant dense<0.000000e+00> : vector<64x16xf32>
    %13 = tpu.matmul %11, %12, %cst_12 {dimension_numbers = #tpu.dot_dimension_numbers<[1], [1], [0], [0], [0, 0, 1, 0], [], []>} : vector<64x32xf32>, vector<16x32xf32>, vector<64x16xf32> -> vector<64x16xf32>
    %cst_13 = arith.constant 0.000000e+00 : f32
    %14 = vector.broadcast %cst_13 : f32 to vector<64x16xf32>
    %15 = arith.maximumf %13, %14 : vector<64x16xf32>
    %c0_14 = arith.constant 0 : index
    %c0_15 = arith.constant 0 : index
    %16 = vector.load %arg4[%c0_14, %c0_15] : memref<32x16xf32, #tpu.memory_space<vmem>>, vector<32x16xf32>
    %cst_16 = arith.constant dense<0.000000e+00> : vector<64x32xf32>
    %17 = tpu.matmul %15, %16, %cst_16 {dimension_numbers = #tpu.dot_dimension_numbers<[1], [1], [0], [0], [0, 0, 1, 0], [], []>} : vector<64x16xf32>, vector<32x16xf32>, vector<64x32xf32> -> vector<64x32xf32>
    %c0_17 = arith.constant 0 : index
    %c0_18 = arith.constant 0 : index
    %18 = vector.load %arg11[%c0_17, %c0_18] : memref<64x8xf32, #tpu.memory_space<vmem>>, vector<64x8xf32>
    %c0_19 = arith.constant 0 : index
    %c0_20 = arith.constant 0 : index
    %19 = vector.load %arg5[%c0_19, %c0_20] : memref<32x8xf32, #tpu.memory_space<vmem>>, vector<32x8xf32>
    %cst_21 = arith.constant dense<0.000000e+00> : vector<64x32xf32>
    %20 = tpu.matmul %18, %19, %cst_21 {dimension_numbers = #tpu.dot_dimension_numbers<[1], [1], [0], [0], [0, 0, 1, 0], [], []>} : vector<64x8xf32>, vector<32x8xf32>, vector<64x32xf32> -> vector<64x32xf32>
    %21 = arith.addf %17, %20 : vector<64x32xf32>
    %c0_22 = arith.constant 0 : index
    %c0_23 = arith.constant 0 : index
    %22 = vector.load %arg14[%c0_22, %c0_23] : memref<32x32xf32, #tpu.memory_space<vmem>>, vector<32x32xf32>
    %c0_24 = arith.constant 0 : index
    %c0_25 = arith.constant 0 : index
    %23 = vector.load %arg13[%c0_24, %c0_25] : memref<8x32xf32, #tpu.memory_space<vmem>>, vector<8x32xf32>
    %cst_26 = arith.constant dense<0.000000e+00> : vector<8x32xf32>
    %24 = tpu.matmul %23, %22, %cst_26 {dimension_numbers = #tpu.dot_dimension_numbers<[1], [1], [0], [0], [0, 0, 1, 0], [], []>} : vector<8x32xf32>, vector<32x32xf32>, vector<8x32xf32> -> vector<8x32xf32>
    %25 = vector.extract_strided_slice %21 {offsets = [0, 0], sizes = [8, 32], strides = [1, 1]} : vector<64x32xf32> to vector<8x32xf32>
    %26 = arith.addf %24, %25 : vector<8x32xf32>
    %c0_27 = arith.constant 0 : index
    %c0_28 = arith.constant 0 : index
    %27 = vector.load %arg12[%c0_27, %c0_28] : memref<64x32xf32, #tpu.memory_space<vmem>>, vector<8x32xf32>
    tpu.vector_store %arg12[%c0_27, %c0_28], %26 {strides = array<i32>} : memref<64x32xf32, #tpu.memory_space<vmem>>, vector<8x32xf32>,
    %cst_29 = arith.constant dense<0.000000e+00> : vector<8x32xf32>
    %28 = tpu.matmul %26, %22, %cst_29 {dimension_numbers = #tpu.dot_dimension_numbers<[1], [1], [0], [0], [0, 0, 1, 0], [], []>} : vector<8x32xf32>, vector<32x32xf32>, vector<8x32xf32> -> vector<8x32xf32>
    %29 = vector.extract_strided_slice %21 {offsets = [8, 0], sizes = [8, 32], strides = [1, 1]} : vector<64x32xf32> to vector<8x32xf32>
    %30 = arith.addf %28, %29 : vector<8x32xf32>
    %c8 = arith.constant 8 : index
    %c0_30 = arith.constant 0 : index
    %31 = vector.load %arg12[%c8, %c0_30] : memref<64x32xf32, #tpu.memory_space<vmem>>, vector<8x32xf32>
    tpu.vector_store %arg12[%c8, %c0_30], %30 {strides = array<i32>} : memref<64x32xf32, #tpu.memory_space<vmem>>, vector<8x32xf32>,
    %cst_31 = arith.constant dense<0.000000e+00> : vector<8x32xf32>
    %32 = tpu.matmul %30, %22, %cst_31 {dimension_numbers = #tpu.dot_dimension_numbers<[1], [1], [0], [0], [0, 0, 1, 0], [], []>} : vector<8x32xf32>, vector<32x32xf32>, vector<8x32xf32> -> vector<8x32xf32>
    %33 = vector.extract_strided_slice %21 {offsets = [16, 0], sizes = [8, 32], strides = [1, 1]} : vector<64x32xf32> to vector<8x32xf32>
    %34 = arith.addf %32, %33 : vector<8x32xf32>
    %c16 = arith.constant 16 : index
    %c0_32 = arith.constant 0 : index
    %35 = vector.load %arg12[%c16, %c0_32] : memref<64x32xf32, #tpu.memory_space<vmem>>, vector<8x32xf32>
    tpu.vector_store %arg12[%c16, %c0_32], %34 {strides = array<i32>} : memref<64x32xf32, #tpu.memory_space<vmem>>, vector<8x32xf32>,
    %cst_33 = arith.constant dense<0.000000e+00> : vector<8x32xf32>
    %36 = tpu.matmul %34, %22, %cst_33 {dimension_numbers = #tpu.dot_dimension_numbers<[1], [1], [0], [0], [0, 0, 1, 0], [], []>} : vector<8x32xf32>, vector<32x32xf32>, vector<8x32xf32> -> vector<8x32xf32>
    %37 = vector.extract_strided_slice %21 {offsets = [24, 0], sizes = [8, 32], strides = [1, 1]} : vector<64x32xf32> to vector<8x32xf32>
    %38 = arith.addf %36, %37 : vector<8x32xf32>
    %c24 = arith.constant 24 : index
    %c0_34 = arith.constant 0 : index
    %39 = vector.load %arg12[%c24, %c0_34] : memref<64x32xf32, #tpu.memory_space<vmem>>, vector<8x32xf32>
    tpu.vector_store %arg12[%c24, %c0_34], %38 {strides = array<i32>} : memref<64x32xf32, #tpu.memory_space<vmem>>, vector<8x32xf32>,
    %cst_35 = arith.constant dense<0.000000e+00> : vector<8x32xf32>
    %40 = tpu.matmul %38, %22, %cst_35 {dimension_numbers = #tpu.dot_dimension_numbers<[1], [1], [0], [0], [0, 0, 1, 0], [], []>} : vector<8x32xf32>, vector<32x32xf32>, vector<8x32xf32> -> vector<8x32xf32>
    %41 = vector.extract_strided_slice %21 {offsets = [32, 0], sizes = [8, 32], strides = [1, 1]} : vector<64x32xf32> to vector<8x32xf32>
    %42 = arith.addf %40, %41 : vector<8x32xf32>
    %c32 = arith.constant 32 : index
    %c0_36 = arith.constant 0 : index
    %43 = vector.load %arg12[%c32, %c0_36] : memref<64x32xf32, #tpu.memory_space<vmem>>, vector<8x32xf32>
    tpu.vector_store %arg12[%c32, %c0_36], %42 {strides = array<i32>} : memref<64x32xf32, #tpu.memory_space<vmem>>, vector<8x32xf32>,
    %cst_37 = arith.constant dense<0.000000e+00> : vector<8x32xf32>
    %44 = tpu.matmul %42, %22, %cst_37 {dimension_numbers = #tpu.dot_dimension_numbers<[1], [1], [0], [0], [0, 0, 1, 0], [], []>} : vector<8x32xf32>, vector<32x32xf32>, vector<8x32xf32> -> vector<8x32xf32>
    %45 = vector.extract_strided_slice %21 {offsets = [40, 0], sizes = [8, 32], strides = [1, 1]} : vector<64x32xf32> to vector<8x32xf32>
    %46 = arith.addf %44, %45 : vector<8x32xf32>
    %c40 = arith.constant 40 : index
    %c0_38 = arith.constant 0 : index
    %47 = vector.load %arg12[%c40, %c0_38] : memref<64x32xf32, #tpu.memory_space<vmem>>, vector<8x32xf32>
    tpu.vector_store %arg12[%c40, %c0_38], %46 {strides = array<i32>} : memref<64x32xf32, #tpu.memory_space<vmem>>, vector<8x32xf32>,
    %cst_39 = arith.constant dense<0.000000e+00> : vector<8x32xf32>
    %48 = tpu.matmul %46, %22, %cst_39 {dimension_numbers = #tpu.dot_dimension_numbers<[1], [1], [0], [0], [0, 0, 1, 0], [], []>} : vector<8x32xf32>, vector<32x32xf32>, vector<8x32xf32> -> vector<8x32xf32>
    %49 = vector.extract_strided_slice %21 {offsets = [48, 0], sizes = [8, 32], strides = [1, 1]} : vector<64x32xf32> to vector<8x32xf32>
    %50 = arith.addf %48, %49 : vector<8x32xf32>
    %c48 = arith.constant 48 : index
    %c0_40 = arith.constant 0 : index
    %51 = vector.load %arg12[%c48, %c0_40] : memref<64x32xf32, #tpu.memory_space<vmem>>, vector<8x32xf32>
    tpu.vector_store %arg12[%c48, %c0_40], %50 {strides = array<i32>} : memref<64x32xf32, #tpu.memory_space<vmem>>, vector<8x32xf32>,
    %cst_41 = arith.constant dense<0.000000e+00> : vector<8x32xf32>
    %52 = tpu.matmul %50, %22, %cst_41 {dimension_numbers = #tpu.dot_dimension_numbers<[1], [1], [0], [0], [0, 0, 1, 0], [], []>} : vector<8x32xf32>, vector<32x32xf32>, vector<8x32xf32> -> vector<8x32xf32>
    %53 = vector.extract_strided_slice %21 {offsets = [56, 0], sizes = [8, 32], strides = [1, 1]} : vector<64x32xf32> to vector<8x32xf32>
    %54 = arith.addf %52, %53 : vector<8x32xf32>
    %c56 = arith.constant 56 : index
    %c0_42 = arith.constant 0 : index
    %55 = vector.load %arg12[%c56, %c0_42] : memref<64x32xf32, #tpu.memory_space<vmem>>, vector<8x32xf32>
    tpu.vector_store %arg12[%c56, %c0_42], %54 {strides = array<i32>} : memref<64x32xf32, #tpu.memory_space<vmem>>, vector<8x32xf32>,
    %c0_43 = arith.constant 0 : index
    %c0_44 = arith.constant 0 : index
    %56 = vector.load %arg13[%c0_43, %c0_44] : memref<8x32xf32, #tpu.memory_space<vmem>>, vector<8x32xf32>
    tpu.vector_store %arg13[%c0_43, %c0_44], %54 {strides = array<i32>} : memref<8x32xf32, #tpu.memory_space<vmem>>, vector<8x32xf32>,
    return
  }
  func.func @transform_0(%arg0: i32) -> (i32, i32) {
    %c0_i32 = arith.constant 0 : i32
    %c0_i32_0 = arith.constant 0 : i32
    %c0_i32_1 = arith.constant 0 : i32
    return %c0_i32, %c0_i32_0 : i32, i32
  }
  func.func @transform_1(%arg0: i32) -> (i32, i32) {
    %c0_i32 = arith.constant 0 : i32
    %c0_i32_0 = arith.constant 0 : i32
    %c0_i32_1 = arith.constant 0 : i32
    return %c0_i32, %c0_i32_0 : i32, i32
  }
  func.func @transform_2(%arg0: i32) -> (i32, i32) {
    %c0_i32 = arith.constant 0 : i32
    %c0_i32_0 = arith.constant 0 : i32
    %c0_i32_1 = arith.constant 0 : i32
    return %c0_i32, %c0_i32_0 : i32, i32
  }
  func.func @transform_3(%arg0: i32) -> (i32, i32) {
    %c0_i32 = arith.constant 0 : i32
    %c0_i32_0 = arith.constant 0 : i32
    %c0_i32_1 = arith.constant 0 : i32
    return %c0_i32, %c0_i32_0 : i32, i32
  }
  func.func @transform_4(%arg0: i32) -> (i32, i32) {
    %c0_i32 = arith.constant 0 : i32
    %c0_i32_0 = arith.constant 0 : i32
    %c0_i32_1 = arith.constant 0 : i32
    return %c0_i32, %c0_i32_0 : i32, i32
  }
  func.func @transform_5(%arg0: i32) -> (i32, i32) {
    %c0_i32 = arith.constant 0 : i32
    %c0_i32_0 = arith.constant 0 : i32
    %c0_i32_1 = arith.constant 0 : i32
    return %c0_i32, %c0_i32_0 : i32, i32
  }
  func.func @transform_6(%arg0: i32) -> (i32, i32) {
    %c0_i32 = arith.constant 0 : i32
    %c0_i32_0 = arith.constant 0 : i32
    %c0_i32_1 = arith.constant 0 : i32
    return %c0_i32, %c0_i32_0 : i32, i32
  }
  func.func @transform_7(%arg0: i32) -> (i32, i32) {
    %c0_i32 = arith.constant 0 : i32
    %c0_i32_0 = arith.constant 0 : i32
    %c0_i32_1 = arith.constant 0 : i32
    return %c0_i32, %c0_i32_0 : i32, i32
  }
  func.func @transform_8(%arg0: i32) -> (i32, i32) {
    %c0_i32 = arith.constant 0 : i32
    %c0_i32_0 = arith.constant 0 : i32
    return %arg0, %c0_i32 : i32, i32
  }
  func.func @transform_9(%arg0: i32) -> (i32, i32) {
    %c0_i32 = arith.constant 0 : i32
    %c0_i32_0 = arith.constant 0 : i32
    return %arg0, %c0_i32 : i32, i32
  }
  func.func @transform_10(%arg0: i32) -> (i32, i32) {
    %c0_i32 = arith.constant 0 : i32
    %c0_i32_0 = arith.constant 0 : i32
    return %arg0, %c0_i32 : i32, i32
  }
  func.func @transform_11(%arg0: i32) -> (i32, i32) {
    %c0_i32 = arith.constant 0 : i32
    %c0_i32_0 = arith.constant 0 : i32
    return %arg0, %c0_i32 : i32, i32
  }
}

</mosaic_0001>

<llo_original>
// kernel: ssm_black_forward.1
$region0: #{ssm_black_forward.1}
  #allocation0 [shape = 'u32[]', space=smem, size = 0x4, offset = 0x4, fixed_abs, tag = 'smem constant byte address 0x4 - core index']
  #allocation1 [shape = 'u32[72,128]{1,0:T(1,128)}', space=vmem, size = 0x9000, scoped, tag = 'internal scratch']
  #allocation2 [shape = 'f32[8,32]{1,0:T(8,128)}', space=vmem, size = 0x1000, scoped, tag = 'scratch operand']
  #allocation3 [shape = 'f32[32,32]{1,0:T(8,128)}', space=vmem, size = 0x4000, scoped, tag = 'scratch operand']
  %s0 = inlined_call_operand.hbm [shape: f32[8,32], index: 0, kind: input, shape index: {}]
  %s1 = inlined_call_operand.vmem [shape: f32[32,32], index: 1, kind: input, shape index: {}]
  %s2 = inlined_call_operand.hbm [shape: f32[32,32], index: 2, kind: input, shape index: {}]
  %s3 = inlined_call_operand.vmem [shape: f32[32,16], index: 3, kind: input, shape index: {}]
  %s4 = inlined_call_operand.vmem [shape: f32[32,8], index: 4, kind: input, shape index: {}]
  %s5 = inlined_call_operand.vmem [shape: f32[32,8], index: 5, kind: input, shape index: {}]
  %s6 = inlined_call_operand.vmem [shape: f32[32,8], index: 6, kind: input, shape index: {}]
  %s7 = inlined_call_operand.vmem [shape: f32[16,32], index: 7, kind: input, shape index: {}]
  %s8 = inlined_call_operand.vmem [shape: f32[64,8], index: 8, kind: input, shape index: {}]
  %s9 = inlined_call_operand.vmem [shape: f32[64,8], index: 9, kind: input, shape index: {}]
  %s10 = inlined_call_operand.vmem [shape: f32[64,8], index: 10, kind: input, shape index: {}]
  %s11 = inlined_call_operand.vmem [shape: f32[64,32], index: 11, kind: output, shape index: {}]
  %s12 = sld [smem:[#allocation0]]
  $region66: #{ssm_black_forward.1} parent=0
    _
  %s14 = ssub.s32 1, %s12
  %s15 = scalar_select 0, %s14, %s12
  $region1: #{ssm_black_forward.1} parent=0
    #allocation4 [shape = 'u8[4096]{0}', space=vmem, size = 0x1000, scoped, tag = 'input window, operand 0, single buffered']
    #allocation5 [shape = 's32[1]{0}', space=sflag, size = 0x4, scoped, tag = 'scoped memory for ssm_black_forward.1']
    #allocation6 [shape = 'u8[16384]{0}', space=vmem, size = 0x4000, scoped, tag = 'input window, operand 2, single buffered']
    #allocation7 [shape = 's32[1]{0}', space=sflag, size = 0x4, scoped, tag = 'scoped memory for ssm_black_forward.1']
    %16 = vsyncpa [#allocation5], 0
    %17 = vsyncpa [#allocation7], 0
    // Predicated region
    $region2: #{ssm_black_forward.1} parent=1 // pred_check
      _
    $region3: #{ssm_black_forward.1} parent=1 // pred_check_branch
      %19 = sbr.rel (0) target = $region5
    $region4: #{ssm_black_forward.1} parent=1 // pred_region
      %21 = vsyncadd [#allocation5], 0
      %s23 = sshll.u32 %s0, 4
      %s24 = int_to_ptr.hbm [resolvable:$true] %s23
      %s25 = sshll.u32 [#allocation4], 4
      %s26 = int_to_ptr.vmem [resolvable:$true] %s25
      %28 = dma.hbm_to_vmem [thread:$0]  %s24, 128, %s26, [#allocation5]
    $region5: #{ssm_black_forward.1} parent=1 // pred_fallthru
      _
    // Predicated region
    $region6: #{ssm_black_forward.1} parent=1 // pred_check
      _
    $region7: #{ssm_black_forward.1} parent=1 // pred_check_branch
      %30 = sbr.rel (0) target = $region9
    $region8: #{ssm_black_forward.1} parent=1 // pred_region
      _
    $region9: #{ssm_black_forward.1} parent=1 // pred_fallthru
      _
    // Predicated region
    $region10: #{ssm_black_forward.1} parent=1 // pred_check
      _
    $region11: #{ssm_black_forward.1} parent=1 // pred_check_branch
      %32 = sbr.rel (0) target = $region13
    $region12: #{ssm_black_forward.1} parent=1 // pred_region
      %34 = vsyncadd [#allocation7], 0
      %s35 = sshll.u32 %s2, 4
      %s36 = int_to_ptr.hbm [resolvable:$true] %s35
      %s37 = sshll.u32 [#allocation6], 4
      %s38 = int_to_ptr.vmem [resolvable:$true] %s37
      %43 = dma.hbm_to_vmem [thread:$0]  %s36, 512, %s38, [#allocation7], 128, 128, 8
    $region13: #{ssm_black_forward.1} parent=1 // pred_fallthru
      _
    // Predicated region
    $region14: #{ssm_black_forward.1} parent=1 // pred_check
      _
    $region15: #{ssm_black_forward.1} parent=1 // pred_check_branch
      %45 = sbr.rel (0) target = $region17
    $region16: #{ssm_black_forward.1} parent=1 // pred_region
      _
    $region17: #{ssm_black_forward.1} parent=1 // pred_fallthru
      _
    // Predicated region
    $region18: #{ssm_black_forward.1} parent=1 // pred_check
      _
    $region19: #{ssm_black_forward.1} parent=1 // pred_check_branch
      %47 = sbr.rel (0) target = $region21
    $region20: #{ssm_black_forward.1} parent=1 // pred_region
      _
    $region21: #{ssm_black_forward.1} parent=1 // pred_fallthru
      _
    // Predicated region
    $region22: #{ssm_black_forward.1} parent=1 // pred_check
      _
    $region23: #{ssm_black_forward.1} parent=1 // pred_check_branch
      %49 = sbr.rel (0) target = $region25
    $region24: #{ssm_black_forward.1} parent=1 // pred_region
      _
    $region25: #{ssm_black_forward.1} parent=1 // pred_fallthru
      _
    // Predicated region
    $region26: #{ssm_black_forward.1} parent=1 // pred_check
      _
    $region27: #{ssm_black_forward.1} parent=1 // pred_check_branch
      %51 = sbr.rel (0) target = $region29
    $region28: #{ssm_black_forward.1} parent=1 // pred_region
      _
    $region29: #{ssm_black_forward.1} parent=1 // pred_fallthru
      _
    // Predicated region
    $region30: #{ssm_black_forward.1} parent=1 // pred_check
      _
    $region31: #{ssm_black_forward.1} parent=1 // pred_check_branch
      %53 = sbr.rel (0) target = $region33
    $region32: #{ssm_black_forward.1} parent=1 // pred_region
      _
    $region33: #{ssm_black_forward.1} parent=1 // pred_fallthru
      _
    // Predicated region
    $region34: #{ssm_black_forward.1} parent=1 // pred_check
      _
    $region35: #{ssm_black_forward.1} parent=1 // pred_check_branch
      %55 = sbr.rel (0) target = $region37
    $region36: #{ssm_black_forward.1} parent=1 // pred_region
      _
    $region37: #{ssm_black_forward.1} parent=1 // pred_fallthru
      _
    // Predicated region
    $region38: #{ssm_black_forward.1} parent=1 // pred_check
      _
    $region39: #{ssm_black_forward.1} parent=1 // pred_check_branch
      %57 = sbr.rel (0) target = $region41
    $region40: #{ssm_black_forward.1} parent=1 // pred_region
      _
    $region41: #{ssm_black_forward.1} parent=1 // pred_fallthru
      _
    // Predicated region
    $region42: #{ssm_black_forward.1} parent=1 // pred_check
      _
    $region43: #{ssm_black_forward.1} parent=1 // pred_check_branch
      %59 = sbr.rel (0) target = $region45
    $region44: #{ssm_black_forward.1} parent=1 // pred_region
      _
    $region45: #{ssm_black_forward.1} parent=1 // pred_fallthru
      _
    // Predicated region
    $region46: #{ssm_black_forward.1} parent=1 // pred_check
      _
    $region47: #{ssm_black_forward.1} parent=1 // pred_check_branch
      %61 = sbr.rel (0) target = $region49
    $region48: #{ssm_black_forward.1} parent=1 // pred_region
      %63 = dma.done [#allocation5], 128
    $region49: #{ssm_black_forward.1} parent=1 // pred_fallthru
      _
    // Predicated region
    $region50: #{ssm_black_forward.1} parent=1 // pred_check
      _
    $region51: #{ssm_black_forward.1} parent=1 // pred_check_branch
      %65 = sbr.rel (0) target = $region53
    $region52: #{ssm_black_forward.1} parent=1 // pred_region
      %67 = dma.done [#allocation7], 512
    $region53: #{ssm_black_forward.1} parent=1 // pred_fallthru
      _
    %p68 = scmp.eq.s32.totalorder 0, 0
    // Predicated region
    $region54: #{ssm_black_forward.1} parent=1 // pred_check
      %p69 = pneg %p68
    $region55: #{ssm_black_forward.1} parent=1 // pred_check_branch
      %71 = sbr.rel (%p69) target = $region57
    $region56: #{ssm_black_forward.1} parent=1 // pred_region
      %v72 = vld [vmem:[#allocation6] sm:$0xff]
      %v73 = vld [vmem:[#allocation6 + $0x8] sm:$0xff]
      %v74 = vld [vmem:[#allocation6 + $0x10] sm:$0xff]
      %v75 = vld [vmem:[#allocation6 + $0x18] sm:$0xff]
      %v76 = vxor.u32 %v72, 2147483648
      %v77 = vxor.u32 %v73, 2147483648
      %v78 = vxor.u32 %v74, 2147483648
      %v79 = vxor.u32 %v75, 2147483648
      %v80 = vmul.f32 %v76, 1.442695
      %v81 = vpow.pop %v80
      %v82 = vmul.f32 %v77, 1.442695
      %v83 = vpow.pop %v82
      %v84 = vmul.f32 %v78, 1.442695
      %v85 = vpow.pop %v84
      %v86 = vmul.f32 %v79, 1.442695
      %v87 = vpow.pop %v86
      %v88 = vadd.f32 %v81, 1.0
      %v89 = vadd.f32 %v83, 1.0
      %v90 = vadd.f32 %v85, 1.0
      %v91 = vadd.f32 %v87, 1.0
      %v92 = vrcp.pop %v88
      %v93 = vmul.f32 %v88, %v92
      %v94 = vsub.f32 1.0, %v93
      %v95 = vmul.f32 %v92, %v94
      %v96 = vadd.f32 %v92, %v95
      %vm97 = vweird.f32 %v88
      %vm98 = vweird.f32 %v92
      %vm99 = vmor %vm97, %vm98
      %v100 = vsel %vm99, %v92, %v96
      %v101 = vand.u32 2147483647, %v88
      %vm102 = vcmp.eq.f32.partialorder %v101, 8.507059e+37
      %v103 = vand.u32 %v88, 2147483648
      %v104 = vor.u32 1.1754944e-38, %v103
      %v105 = vsel %vm102, %v104, %v100
      %v106 = vmul.f32 1.0, %v105
      %v107 = vrcp.pop %v89
      %v108 = vmul.f32 %v89, %v107
      %v109 = vsub.f32 1.0, %v108
      %v110 = vmul.f32 %v107, %v109
      %v111 = vadd.f32 %v107, %v110
      %vm112 = vweird.f32 %v89
      %vm113 = vweird.f32 %v107
      %vm114 = vmor %vm112, %vm113
      %v115 = vsel %vm114, %v107, %v111
      %v116 = vand.u32 2147483647, %v89
      %vm117 = vcmp.eq.f32.partialorder %v116, 8.507059e+37
      %v118 = vand.u32 %v89, 2147483648
      %v119 = vor.u32 1.1754944e-38, %v118
      %v120 = vsel %vm117, %v119, %v115
      %v121 = vmul.f32 1.0, %v120
      %v122 = vrcp.pop %v90
      %v123 = vmul.f32 %v90, %v122
      %v124 = vsub.f32 1.0, %v123
      %v125 = vmul.f32 %v122, %v124
      %v126 = vadd.f32 %v122, %v125
      %vm127 = vweird.f32 %v90
      %vm128 = vweird.f32 %v122
      %vm129 = vmor %vm127, %vm128
      %v130 = vsel %vm129, %v122, %v126
      %v131 = vand.u32 2147483647, %v90
      %vm132 = vcmp.eq.f32.partialorder %v131, 8.507059e+37
      %v133 = vand.u32 %v90, 2147483648
      %v134 = vor.u32 1.1754944e-38, %v133
      %v135 = vsel %vm132, %v134, %v130
      %v136 = vmul.f32 1.0, %v135
      %v137 = vrcp.pop %v91
      %v138 = vmul.f32 %v91, %v137
      %v139 = vsub.f32 1.0, %v138
      %v140 = vmul.f32 %v137, %v139
      %v141 = vadd.f32 %v137, %v140
      %vm142 = vweird.f32 %v91
      %vm143 = vweird.f32 %v137
      %vm144 = vmor %vm142, %vm143
      %v145 = vsel %vm144, %v137, %v141
      %v146 = vand.u32 2147483647, %v91
      %vm147 = vcmp.eq.f32.partialorder %v146, 8.507059e+37
      %v148 = vand.u32 %v91, 2147483648
      %v149 = vor.u32 1.1754944e-38, %v148
      %v150 = vsel %vm147, %v149, %v145
      %v151 = vmul.f32 1.0, %v150
      %v152 = vmul.f32 %v106, 0.1
      %v153 = vmul.f32 %v121, 0.1
      %v154 = vmul.f32 %v136, 0.1
      %v155 = vmul.f32 %v151, 0.1
      %v156 = vsub.f32 1.0, %v152
      %v157 = vsub.f32 1.0, %v153
      %v158 = vsub.f32 1.0, %v154
      %v159 = vsub.f32 1.0, %v155
      %v160 = vld [vmem:[%s1] sm:$0xff]
      %v161 = vld [vmem:[%s1 + $0x8] sm:$0xff]
      %v162 = vld [vmem:[%s1 + $0x10] sm:$0xff]
      %v163 = vld [vmem:[%s1 + $0x18] sm:$0xff]
      %vm164 = vcmask 261120
      %v165 = vsel %vm164, %v160, -inf
      %166 = vmax.xlane.f32.xlu0 %v165
      %v167 = vpop.xlane.xlu0 %166
      %v168 = vsel %vm164, %v161, -inf
      %169 = vmax.xlane.f32.xlu0 %v168
      %v170 = vpop.xlane.xlu0 %169
      %v171 = vsel %vm164, %v162, -inf
      %172 = vmax.xlane.f32.xlu0 %v171
      %v173 = vpop.xlane.xlu0 %172
      %v174 = vsel %vm164, %v163, -inf
      %175 = vmax.xlane.f32.xlu0 %v174
      %v176 = vpop.xlane.xlu0 %175
      %v177 = vsub.f32 %v160, %v167
      %v178 = vsub.f32 %v161, %v170
      %v179 = vsub.f32 %v162, %v173
      %v180 = vsub.f32 %v163, %v176
      %v181 = vmul.f32 %v177, 1.442695
      %v182 = vpow.pop %v181
      %v183 = vmul.f32 %v178, 1.442695
      %v184 = vpow.pop %v183
      %v185 = vmul.f32 %v179, 1.442695
      %v186 = vpow.pop %v185
      %v187 = vmul.f32 %v180, 1.442695
      %v188 = vpow.pop %v187
      %v189 = vsel %vm164, %v182, 0.0
      %190 = vadd.xlane.f32.xlu0 %v189
      %v191 = vpop.xlane.xlu0 %190
      %v192 = vsel %vm164, %v184, 0.0
      %193 = vadd.xlane.f32.xlu0 %v192
      %v194 = vpop.xlane.xlu0 %193
      %v195 = vsel %vm164, %v186, 0.0
      %196 = vadd.xlane.f32.xlu0 %v195
      %v197 = vpop.xlane.xlu0 %196
      %v198 = vsel %vm164, %v188, 0.0
      %199 = vadd.xlane.f32.xlu0 %v198
      %v200 = vpop.xlane.xlu0 %199
      %v201 = vrcp.pop %v191
      %v202 = vmul.f32 %v191, %v201
      %v203 = vsub.f32 1.0, %v202
      %v204 = vmul.f32 %v201, %v203
      %v205 = vadd.f32 %v201, %v204
      %vm206 = vweird.f32 %v191
      %vm207 = vweird.f32 %v201
      %vm208 = vmor %vm206, %vm207
      %v209 = vsel %vm208, %v201, %v205
      %v210 = vand.u32 2147483647, %v191
      %vm211 = vcmp.eq.f32.partialorder %v210, 8.507059e+37
      %v212 = vand.u32 %v191, 2147483648
      %v213 = vor.u32 1.1754944e-38, %v212
      %v214 = vsel %vm211, %v213, %v209
      %v215 = vmul.f32 %v182, %v214
      %v216 = vrcp.pop %v194
      %v217 = vmul.f32 %v194, %v216
      %v218 = vsub.f32 1.0, %v217
      %v219 = vmul.f32 %v216, %v218
      %v220 = vadd.f32 %v216, %v219
      %vm221 = vweird.f32 %v194
      %vm222 = vweird.f32 %v216
      %vm223 = vmor %vm221, %vm222
      %v224 = vsel %vm223, %v216, %v220
      %v225 = vand.u32 2147483647, %v194
      %vm226 = vcmp.eq.f32.partialorder %v225, 8.507059e+37
      %v227 = vand.u32 %v194, 2147483648
      %v228 = vor.u32 1.1754944e-38, %v227
      %v229 = vsel %vm226, %v228, %v224
      %v230 = vmul.f32 %v184, %v229
      %v231 = vrcp.pop %v197
      %v232 = vmul.f32 %v197, %v231
      %v233 = vsub.f32 1.0, %v232
      %v234 = vmul.f32 %v231, %v233
      %v235 = vadd.f32 %v231, %v234
      %vm236 = vweird.f32 %v197
      %vm237 = vweird.f32 %v231
      %vm238 = vmor %vm236, %vm237
      %v239 = vsel %vm238, %v231, %v235
      %v240 = vand.u32 2147483647, %v197
      %vm241 = vcmp.eq.f32.partialorder %v240, 8.507059e+37
      %v242 = vand.u32 %v197, 2147483648
      %v243 = vor.u32 1.1754944e-38, %v242
      %v244 = vsel %vm241, %v243, %v239
      %v245 = vmul.f32 %v186, %v244
      %v246 = vrcp.pop %v200
      %v247 = vmul.f32 %v200, %v246
      %v248 = vsub.f32 1.0, %v247
      %v249 = vmul.f32 %v246, %v248
      %v250 = vadd.f32 %v246, %v249
      %vm251 = vweird.f32 %v200
      %vm252 = vweird.f32 %v246
      %vm253 = vmor %vm251, %vm252
      %v254 = vsel %vm253, %v246, %v250
      %v255 = vand.u32 2147483647, %v200
      %vm256 = vcmp.eq.f32.partialorder %v255, 8.507059e+37
      %v257 = vand.u32 %v200, 2147483648
      %v258 = vor.u32 1.1754944e-38, %v257
      %v259 = vsel %vm256, %v258, %v254
      %v260 = vmul.f32 %v188, %v259
      %v261 = vmul.f32 %v156, %v215
      %v262 = vmul.f32 %v157, %v230
      %v263 = vmul.f32 %v158, %v245
      %v264 = vmul.f32 %v159, %v260
      %265 = vst.msk [vmem:[#allocation3] sm:$0xff] %vm164, %v261
      %266 = vst.msk [vmem:[#allocation3 + $0x8] sm:$0xff] %vm164, %v262
      %267 = vst.msk [vmem:[#allocation3 + $0x10] sm:$0xff] %vm164, %v263
      %268 = vst.msk [vmem:[#allocation3 + $0x18] sm:$0xff] %vm164, %v264
      %v269 = vld [vmem:[#allocation4] sm:$0xff]
      %270 = vst.msk [vmem:[#allocation2] sm:$0xff] %vm164, %v269
    $region57: #{ssm_black_forward.1} parent=1 // pred_fallthru
      _
    %v271 = vld [vmem:[%s8] sm:$0xff]
    %v272 = vld [vmem:[%s8 + $0x8] sm:$0xff]
    %v273 = vld [vmem:[%s8 + $0x10] sm:$0xff]
    %v274 = vld [vmem:[%s8 + $0x18] sm:$0xff]
    %v275 = vld [vmem:[%s8 + $0x20] sm:$0xff]
    %v276 = vld [vmem:[%s8 + $0x28] sm:$0xff]
    %v277 = vld [vmem:[%s8 + $0x30] sm:$0xff]
    %v278 = vld [vmem:[%s8 + $0x38] sm:$0xff]
    %v279 = vld [vmem:[%s5] sm:$0xff]
    %v280 = vld [vmem:[%s5 + $0x8] sm:$0xff]
    %v281 = vld [vmem:[%s5 + $0x10] sm:$0xff]
    %v282 = vld [vmem:[%s5 + $0x18] sm:$0xff]
    %v283 = vld [vmem:[%s9] sm:$0xff]
    %v284 = vld [vmem:[%s9 + $0x8] sm:$0xff]
    %v285 = vld [vmem:[%s9 + $0x10] sm:$0xff]
    %v286 = vld [vmem:[%s9 + $0x18] sm:$0xff]
    %v287 = vld [vmem:[%s9 + $0x20] sm:$0xff]
    %v288 = vld [vmem:[%s9 + $0x28] sm:$0xff]
    %v289 = vld [vmem:[%s9 + $0x30] sm:$0xff]
    %v290 = vld [vmem:[%s9 + $0x38] sm:$0xff]
    %v291 = vld [vmem:[%s6] sm:$0xff]
    %v292 = vld [vmem:[%s6 + $0x8] sm:$0xff]
    %v293 = vld [vmem:[%s6 + $0x10] sm:$0xff]
    %v294 = vld [vmem:[%s6 + $0x18] sm:$0xff]
    %vm295 = vcmask 64512
    %v297 = vsel %vm295, %v283, 0
    %v300 = vsel %vm295, %v284, 0
    %v303 = vsel %vm295, %v285, 0
    %v306 = vsel %vm295, %v286, 0
    %v309 = vsel %vm295, %v287, 0
    %v312 = vsel %vm295, %v288, 0
    %v315 = vsel %vm295, %v289, 0
    %v318 = vsel %vm295, %v290, 0
    %v321 = vsel %vm295, %v291, 0
    %v324 = vsel %vm295, %v292, 0
    %v327 = vsel %vm295, %v293, 0
    %v330 = vsel %vm295, %v294, 0
    %332 = vmatpush.xpose.msra.mxu0 0.0
    %333 = vmatpush.xpose.msra.mxu0 0.0
    %334 = vmatpush.xpose.msra.mxu0 0.0
    %335 = vmatpush.xpose.msra.mxu0 0.0
    %336 = vmatpush.xpose.msra.mxu0 0.0
    %337 = vmatpush.xpose.msra.mxu0 0.0
    %338 = vmatpush.xpose.msra.mxu0 0.0
    %339 = vmatpush.xpose.msra.mxu0 0.0
    %340 = vmatpush.xpose.msra.mxu0 0.0
    %341 = vmatpush.xpose.msra.mxu0 0.0
    %342 = vmatpush.xpose.msra.mxu0 0.0
    %343 = vmatpush.xpose.msra.mxu0 0.0
    %344 = vmatpush.xpose.msra.mxu0 %v330
    %345 = vmatpush.xpose.msra.mxu0 %v327
    %346 = vmatpush.xpose.msra.mxu0 %v324
    %347 = vmatpush.xpose.msra.mxu0 %v321
    %348 = vmatmul.f32.gmra.mxu0 %v297
    %v349 = vpop.f32.mrf.mxu0
    %v350 = vadd.f32 0.0, %v349
    %351 = vmatmul.f32.gmra.mxu0 %v300
    %v352 = vpop.f32.mrf.mxu0
    %v353 = vadd.f32 0.0, %v352
    %354 = vmatmul.f32.gmra.mxu0 %v303
    %v355 = vpop.f32.mrf.mxu0
    %v356 = vadd.f32 0.0, %v355
    %357 = vmatmul.f32.gmra.mxu0 %v306
    %v358 = vpop.f32.mrf.mxu0
    %v359 = vadd.f32 0.0, %v358
    %360 = vmatmul.f32.gmra.mxu0 %v309
    %v361 = vpop.f32.mrf.mxu0
    %v362 = vadd.f32 0.0, %v361
    %363 = vmatmul.f32.gmra.mxu0 %v312
    %v364 = vpop.f32.mrf.mxu0
    %v365 = vadd.f32 0.0, %v364
    %366 = vmatmul.f32.gmra.mxu0 %v315
    %v367 = vpop.f32.mrf.mxu0
    %v368 = vadd.f32 0.0, %v367
    %369 = vmatmul.f32.gmra.mxu0 %v318
    %v370 = vpop.f32.mrf.mxu0
    %v371 = vadd.f32 0.0, %v370
    %372 = vdwg.mxu0
    %v374 = vsel %vm295, %v271, 0
    %v377 = vsel %vm295, %v272, 0
    %v380 = vsel %vm295, %v273, 0
    %v383 = vsel %vm295, %v274, 0
    %v386 = vsel %vm295, %v275, 0
    %v389 = vsel %vm295, %v276, 0
    %v392 = vsel %vm295, %v277, 0
    %v395 = vsel %vm295, %v278, 0
    %v398 = vsel %vm295, %v279, 0
    %v401 = vsel %vm295, %v280, 0
    %v404 = vsel %vm295, %v281, 0
    %v407 = vsel %vm295, %v282, 0
    %409 = vmatpush.xpose.msra.mxu0 0.0
    %410 = vmatpush.xpose.msra.mxu0 0.0
    %411 = vmatpush.xpose.msra.mxu0 0.0
    %412 = vmatpush.xpose.msra.mxu0 0.0
    %413 = vmatpush.xpose.msra.mxu0 0.0
    %414 = vmatpush.xpose.msra.mxu0 0.0
    %415 = vmatpush.xpose.msra.mxu0 0.0
    %416 = vmatpush.xpose.msra.mxu0 0.0
    %417 = vmatpush.xpose.msra.mxu0 0.0
    %418 = vmatpush.xpose.msra.mxu0 0.0
    %419 = vmatpush.xpose.msra.mxu0 0.0
    %420 = vmatpush.xpose.msra.mxu0 0.0
    %421 = vmatpush.xpose.msra.mxu0 %v407
    %422 = vmatpush.xpose.msra.mxu0 %v404
    %423 = vmatpush.xpose.msra.mxu0 %v401
    %424 = vmatpush.xpose.msra.mxu0 %v398
    %425 = vmatmul.f32.gmra.mxu0 %v374
    %v426 = vpop.f32.mrf.mxu0
    %v427 = vadd.f32 %v350, %v426
    %428 = vmatmul.f32.gmra.mxu0 %v377
    %v429 = vpop.f32.mrf.mxu0
    %v430 = vadd.f32 %v353, %v429
    %431 = vmatmul.f32.gmra.mxu0 %v380
    %v432 = vpop.f32.mrf.mxu0
    %v433 = vadd.f32 %v356, %v432
    %434 = vmatmul.f32.gmra.mxu0 %v383
    %v435 = vpop.f32.mrf.mxu0
    %v436 = vadd.f32 %v359, %v435
    %437 = vmatmul.f32.gmra.mxu0 %v386
    %v438 = vpop.f32.mrf.mxu0
    %v439 = vadd.f32 %v362, %v438
    %440 = vmatmul.f32.gmra.mxu0 %v389
    %v441 = vpop.f32.mrf.mxu0
    %v442 = vadd.f32 %v365, %v441
    %443 = vmatmul.f32.gmra.mxu0 %v392
    %v444 = vpop.f32.mrf.mxu0
    %v445 = vadd.f32 %v368, %v444
    %446 = vmatmul.f32.gmra.mxu0 %v395
    %v447 = vpop.f32.mrf.mxu0
    %v448 = vadd.f32 %v371, %v447
    %449 = vdwg.mxu0
    %v450 = vmax.f32 %v427, 0.0
    %v451 = vmax.f32 %v430, 0.0
    %v452 = vmax.f32 %v433, 0.0
    %v453 = vmax.f32 %v436, 0.0
    %v454 = vmax.f32 %v439, 0.0
    %v455 = vmax.f32 %v442, 0.0
    %v456 = vmax.f32 %v445, 0.0
    %v457 = vmax.f32 %v448, 0.0
    %v458 = vld [vmem:[%s7] sm:$0xff]
    %v459 = vld [vmem:[%s7 + $0x8] sm:$0xff]
    %vm460 = vcmask 261120
    %v462 = vsel %vm460, %v450, 0
    %v465 = vsel %vm460, %v451, 0
    %v468 = vsel %vm460, %v452, 0
    %v471 = vsel %vm460, %v453, 0
    %v474 = vsel %vm460, %v454, 0
    %v477 = vsel %vm460, %v455, 0
    %v480 = vsel %vm460, %v456, 0
    %v483 = vsel %vm460, %v457, 0
    %v486 = vsel %vm460, %v458, 0
    %v489 = vsel %vm460, %v459, 0
    %491 = vmatpush.xpose.msra.mxu0 0.0
    %492 = vmatpush.xpose.msra.mxu0 0.0
    %493 = vmatpush.xpose.msra.mxu0 0.0
    %494 = vmatpush.xpose.msra.mxu0 0.0
    %495 = vmatpush.xpose.msra.mxu0 0.0
    %496 = vmatpush.xpose.msra.mxu0 0.0
    %497 = vmatpush.xpose.msra.mxu0 0.0
    %498 = vmatpush.xpose.msra.mxu0 0.0
    %499 = vmatpush.xpose.msra.mxu0 0.0
    %500 = vmatpush.xpose.msra.mxu0 0.0
    %501 = vmatpush.xpose.msra.mxu0 0.0
    %502 = vmatpush.xpose.msra.mxu0 0.0
    %503 = vmatpush.xpose.msra.mxu0 0.0
    %504 = vmatpush.xpose.msra.mxu0 0.0
    %505 = vmatpush.xpose.msra.mxu0 %v489
    %506 = vmatpush.xpose.msra.mxu0 %v486
    %507 = vmatmul.f32.gmra.mxu0 %v462
    %v508 = vpop.f32.mrf.mxu0
    %v509 = vadd.f32 0.0, %v508
    %510 = vmatmul.f32.gmra.mxu0 %v465
    %v511 = vpop.f32.mrf.mxu0
    %v512 = vadd.f32 0.0, %v511
    %513 = vmatmul.f32.gmra.mxu0 %v468
    %v514 = vpop.f32.mrf.mxu0
    %v515 = vadd.f32 0.0, %v514
    %516 = vmatmul.f32.gmra.mxu0 %v471
    %v517 = vpop.f32.mrf.mxu0
    %v518 = vadd.f32 0.0, %v517
    %519 = vmatmul.f32.gmra.mxu0 %v474
    %v520 = vpop.f32.mrf.mxu0
    %v521 = vadd.f32 0.0, %v520
    %522 = vmatmul.f32.gmra.mxu0 %v477
    %v523 = vpop.f32.mrf.mxu0
    %v524 = vadd.f32 0.0, %v523
    %525 = vmatmul.f32.gmra.mxu0 %v480
    %v526 = vpop.f32.mrf.mxu0
    %v527 = vadd.f32 0.0, %v526
    %528 = vmatmul.f32.gmra.mxu0 %v483
    %v529 = vpop.f32.mrf.mxu0
    %v530 = vadd.f32 0.0, %v529
    %531 = vdwg.mxu0
    %v532 = vmax.f32 %v509, 0.0
    %v533 = vmax.f32 %v512, 0.0
    %v534 = vmax.f32 %v515, 0.0
    %v535 = vmax.f32 %v518, 0.0
    %v536 = vmax.f32 %v521, 0.0
    %v537 = vmax.f32 %v524, 0.0
    %v538 = vmax.f32 %v527, 0.0
    %v539 = vmax.f32 %v530, 0.0
    %v540 = vld [vmem:[%s3] sm:$0xff]
    %v541 = vld [vmem:[%s3 + $0x8] sm:$0xff]
    %v542 = vld [vmem:[%s3 + $0x10] sm:$0xff]
    %v543 = vld [vmem:[%s3 + $0x18] sm:$0xff]
    %v544 = vld [vmem:[%s10] sm:$0xff]
    %v545 = vld [vmem:[%s10 + $0x8] sm:$0xff]
    %v546 = vld [vmem:[%s10 + $0x10] sm:$0xff]
    %v547 = vld [vmem:[%s10 + $0x18] sm:$0xff]
    %v548 = vld [vmem:[%s10 + $0x20] sm:$0xff]
    %v549 = vld [vmem:[%s10 + $0x28] sm:$0xff]
    %v550 = vld [vmem:[%s10 + $0x30] sm:$0xff]
    %v551 = vld [vmem:[%s10 + $0x38] sm:$0xff]
    %v552 = vld [vmem:[%s4] sm:$0xff]
    %v553 = vld [vmem:[%s4 + $0x8] sm:$0xff]
    %v554 = vld [vmem:[%s4 + $0x10] sm:$0xff]
    %v555 = vld [vmem:[%s4 + $0x18] sm:$0xff]
    %v557 = vsel %vm295, %v544, 0
    %v560 = vsel %vm295, %v545, 0
    %v563 = vsel %vm295, %v546, 0
    %v566 = vsel %vm295, %v547, 0
    %v569 = vsel %vm295, %v548, 0
    %v572 = vsel %vm295, %v549, 0
    %v575 = vsel %vm295, %v550, 0
    %v578 = vsel %vm295, %v551, 0
    %v581 = vsel %vm295, %v552, 0
    %v584 = vsel %vm295, %v553, 0
    %v587 = vsel %vm295, %v554, 0
    %v590 = vsel %vm295, %v555, 0
    %592 = vmatpush.xpose.msra.mxu0 0.0
    %593 = vmatpush.xpose.msra.mxu0 0.0
    %594 = vmatpush.xpose.msra.mxu0 0.0
    %595 = vmatpush.xpose.msra.mxu0 0.0
    %596 = vmatpush.xpose.msra.mxu0 0.0
    %597 = vmatpush.xpose.msra.mxu0 0.0
    %598 = vmatpush.xpose.msra.mxu0 0.0
    %599 = vmatpush.xpose.msra.mxu0 0.0
    %600 = vmatpush.xpose.msra.mxu0 0.0
    %601 = vmatpush.xpose.msra.mxu0 0.0
    %602 = vmatpush.xpose.msra.mxu0 0.0
    %603 = vmatpush.xpose.msra.mxu0 0.0
    %604 = vmatpush.xpose.msra.mxu0 %v590
    %605 = vmatpush.xpose.msra.mxu0 %v587
    %606 = vmatpush.xpose.msra.mxu0 %v584
    %607 = vmatpush.xpose.msra.mxu0 %v581
    %608 = vmatmul.f32.gmra.mxu0 %v557
    %v609 = vpop.f32.mrf.mxu0
    %v610 = vadd.f32 0.0, %v609
    %611 = vmatmul.f32.gmra.mxu0 %v560
    %v612 = vpop.f32.mrf.mxu0
    %v613 = vadd.f32 0.0, %v612
    %614 = vmatmul.f32.gmra.mxu0 %v563
    %v615 = vpop.f32.mrf.mxu0
    %v616 = vadd.f32 0.0, %v615
    %617 = vmatmul.f32.gmra.mxu0 %v566
    %v618 = vpop.f32.mrf.mxu0
    %v619 = vadd.f32 0.0, %v618
    %620 = vmatmul.f32.gmra.mxu0 %v569
    %v621 = vpop.f32.mrf.mxu0
    %v622 = vadd.f32 0.0, %v621
    %623 = vmatmul.f32.gmra.mxu0 %v572
    %v624 = vpop.f32.mrf.mxu0
    %v625 = vadd.f32 0.0, %v624
    %626 = vmatmul.f32.gmra.mxu0 %v575
    %v627 = vpop.f32.mrf.mxu0
    %v628 = vadd.f32 0.0, %v627
    %629 = vmatmul.f32.gmra.mxu0 %v578
    %v630 = vpop.f32.mrf.mxu0
    %v631 = vadd.f32 0.0, %v630
    %632 = vdwg.mxu0
    %vm633 = vcmask 130048
    %v635 = vsel %vm633, %v532, 0
    %v638 = vsel %vm633, %v533, 0
    %v641 = vsel %vm633, %v534, 0
    %v644 = vsel %vm633, %v535, 0
    %v647 = vsel %vm633, %v536, 0
    %v650 = vsel %vm633, %v537, 0
    %v653 = vsel %vm633, %v538, 0
    %v656 = vsel %vm633, %v539, 0
    %v659 = vsel %vm633, %v540, 0
    %v662 = vsel %vm633, %v541, 0
    %v665 = vsel %vm633, %v542, 0
    %v668 = vsel %vm633, %v543, 0
    %670 = vmatpush.xpose.msra.mxu0 0.0
    %671 = vmatpush.xpose.msra.mxu0 0.0
    %672 = vmatpush.xpose.msra.mxu0 0.0
    %673 = vmatpush.xpose.msra.mxu0 0.0
    %674 = vmatpush.xpose.msra.mxu0 0.0
    %675 = vmatpush.xpose.msra.mxu0 0.0
    %676 = vmatpush.xpose.msra.mxu0 0.0
    %677 = vmatpush.xpose.msra.mxu0 0.0
    %678 = vmatpush.xpose.msra.mxu0 0.0
    %679 = vmatpush.xpose.msra.mxu0 0.0
    %680 = vmatpush.xpose.msra.mxu0 0.0
    %681 = vmatpush.xpose.msra.mxu0 0.0
    %682 = vmatpush.xpose.msra.mxu0 %v668
    %683 = vmatpush.xpose.msra.mxu0 %v665
    %684 = vmatpush.xpose.msra.mxu0 %v662
    %685 = vmatpush.xpose.msra.mxu0 %v659
    %686 = vmatmul.f32.gmra.mxu0 %v635
    %v687 = vpop.f32.mrf.mxu0
    %v688 = vadd.f32 %v610, %v687
    %689 = vmatmul.f32.gmra.mxu0 %v638
    %v690 = vpop.f32.mrf.mxu0
    %v691 = vadd.f32 %v613, %v690
    %692 = vmatmul.f32.gmra.mxu0 %v641
    %v693 = vpop.f32.mrf.mxu0
    %v694 = vadd.f32 %v616, %v693
    %695 = vmatmul.f32.gmra.mxu0 %v644
    %v696 = vpop.f32.mrf.mxu0
    %v697 = vadd.f32 %v619, %v696
    %698 = vmatmul.f32.gmra.mxu0 %v647
    %v699 = vpop.f32.mrf.mxu0
    %v700 = vadd.f32 %v622, %v699
    %701 = vmatmul.f32.gmra.mxu0 %v650
    %v702 = vpop.f32.mrf.mxu0
    %v703 = vadd.f32 %v625, %v702
    %704 = vmatmul.f32.gmra.mxu0 %v653
    %v705 = vpop.f32.mrf.mxu0
    %v706 = vadd.f32 %v628, %v705
    %707 = vmatmul.f32.gmra.mxu0 %v656
    %v708 = vpop.f32.mrf.mxu0
    %v709 = vadd.f32 %v631, %v708
    %710 = vdwg.mxu0
    %v711 = vld [vmem:[#allocation3] sm:$0xff]
    %v712 = vld [vmem:[#allocation3 + $0x8] sm:$0xff]
    %v713 = vld [vmem:[#allocation3 + $0x10] sm:$0xff]
    %v714 = vld [vmem:[#allocation3 + $0x18] sm:$0xff]
    %v715 = vld [vmem:[#allocation2] sm:$0xff]
    %v717 = vsel %vm460, %v715, 0
    %v720 = vsel %vm460, %v711, 0
    %v723 = vsel %vm460, %v712, 0
    %v726 = vsel %vm460, %v713, 0
    %v729 = vsel %vm460, %v714, 0
    %731 = vmatpush.xpose.msra.mxu0 0.0
    %732 = vmatpush.xpose.msra.mxu0 0.0
    %733 = vmatpush.xpose.msra.mxu0 0.0
    %734 = vmatpush.xpose.msra.mxu0 0.0
    %735 = vmatpush.xpose.msra.mxu0 0.0
    %736 = vmatpush.xpose.msra.mxu0 0.0
    %737 = vmatpush.xpose.msra.mxu0 0.0
    %738 = vmatpush.xpose.msra.mxu0 0.0
    %739 = vmatpush.xpose.msra.mxu0 0.0
    %740 = vmatpush.xpose.msra.mxu0 0.0
    %741 = vmatpush.xpose.msra.mxu0 0.0
    %742 = vmatpush.xpose.msra.mxu0 0.0
    %743 = vmatpush.xpose.msra.mxu0 %v729
    %744 = vmatpush.xpose.msra.mxu0 %v726
    %745 = vmatpush.xpose.msra.mxu0 %v723
    %746 = vmatpush.xpose.msra.mxu0 %v720
    %747 = vmatmul.f32.gmra.mxu0 %v717
    %v748 = vpop.f32.mrf.mxu0
    %v749 = vadd.f32 %v688, %v748
    %750 = vdwg.mxu0
    %751 = vst.msk [vmem:[%s11] sm:$0xff] %vm460, %v749
    %v753 = vsel %vm460, %v749, 0
    %755 = vmatpush.xpose.msra.mxu0 0.0
    %756 = vmatpush.xpose.msra.mxu0 0.0
    %757 = vmatpush.xpose.msra.mxu0 0.0
    %758 = vmatpush.xpose.msra.mxu0 0.0
    %759 = vmatpush.xpose.msra.mxu0 0.0
    %760 = vmatpush.xpose.msra.mxu0 0.0
    %761 = vmatpush.xpose.msra.mxu0 0.0
    %762 = vmatpush.xpose.msra.mxu0 0.0
    %763 = vmatpush.xpose.msra.mxu0 0.0
    %764 = vmatpush.xpose.msra.mxu0 0.0
    %765 = vmatpush.xpose.msra.mxu0 0.0
    %766 = vmatpush.xpose.msra.mxu0 0.0
    %767 = vmatpush.xpose.msra.mxu0 %v729
    %768 = vmatpush.xpose.msra.mxu0 %v726
    %769 = vmatpush.xpose.msra.mxu0 %v723
    %770 = vmatpush.xpose.msra.mxu0 %v720
    %771 = vmatmul.f32.gmra.mxu0 %v753
    %v772 = vpop.f32.mrf.mxu0
    %v773 = vadd.f32 %v691, %v772
    %774 = vdwg.mxu0
    %775 = vst.msk [vmem:[%s11 + $0x8] sm:$0xff] %vm460, %v773
    %v777 = vsel %vm460, %v773, 0
    %779 = vmatpush.xpose.msra.mxu0 0.0
    %780 = vmatpush.xpose.msra.mxu0 0.0
    %781 = vmatpush.xpose.msra.mxu0 0.0
    %782 = vmatpush.xpose.msra.mxu0 0.0
    %783 = vmatpush.xpose.msra.mxu0 0.0
    %784 = vmatpush.xpose.msra.mxu0 0.0
    %785 = vmatpush.xpose.msra.mxu0 0.0
    %786 = vmatpush.xpose.msra.mxu0 0.0
    %787 = vmatpush.xpose.msra.mxu0 0.0
    %788 = vmatpush.xpose.msra.mxu0 0.0
    %789 = vmatpush.xpose.msra.mxu0 0.0
    %790 = vmatpush.xpose.msra.mxu0 0.0
    %791 = vmatpush.xpose.msra.mxu0 %v729
    %792 = vmatpush.xpose.msra.mxu0 %v726
    %793 = vmatpush.xpose.msra.mxu0 %v723
    %794 = vmatpush.xpose.msra.mxu0 %v720
    %795 = vmatmul.f32.gmra.mxu0 %v777
    %v796 = vpop.f32.mrf.mxu0
    %v797 = vadd.f32 %v694, %v796
    %798 = vdwg.mxu0
    %799 = vst.msk [vmem:[%s11 + $0x10] sm:$0xff] %vm460, %v797
    %v801 = vsel %vm460, %v797, 0
    %803 = vmatpush.xpose.msra.mxu0 0.0
    %804 = vmatpush.xpose.msra.mxu0 0.0
    %805 = vmatpush.xpose.msra.mxu0 0.0
    %806 = vmatpush.xpose.msra.mxu0 0.0
    %807 = vmatpush.xpose.msra.mxu0 0.0
    %808 = vmatpush.xpose.msra.mxu0 0.0
    %809 = vmatpush.xpose.msra.mxu0 0.0
    %810 = vmatpush.xpose.msra.mxu0 0.0
    %811 = vmatpush.xpose.msra.mxu0 0.0
    %812 = vmatpush.xpose.msra.mxu0 0.0
    %813 = vmatpush.xpose.msra.mxu0 0.0
    %814 = vmatpush.xpose.msra.mxu0 0.0
    %815 = vmatpush.xpose.msra.mxu0 %v729
    %816 = vmatpush.xpose.msra.mxu0 %v726
    %817 = vmatpush.xpose.msra.mxu0 %v723
    %818 = vmatpush.xpose.msra.mxu0 %v720
    %819 = vmatmul.f32.gmra.mxu0 %v801
    %v820 = vpop.f32.mrf.mxu0
    %v821 = vadd.f32 %v697, %v820
    %822 = vdwg.mxu0
    %823 = vst.msk [vmem:[%s11 + $0x18] sm:$0xff] %vm460, %v821
    %v825 = vsel %vm460, %v821, 0
    %827 = vmatpush.xpose.msra.mxu0 0.0
    %828 = vmatpush.xpose.msra.mxu0 0.0
    %829 = vmatpush.xpose.msra.mxu0 0.0
    %830 = vmatpush.xpose.msra.mxu0 0.0
    %831 = vmatpush.xpose.msra.mxu0 0.0
    %832 = vmatpush.xpose.msra.mxu0 0.0
    %833 = vmatpush.xpose.msra.mxu0 0.0
    %834 = vmatpush.xpose.msra.mxu0 0.0
    %835 = vmatpush.xpose.msra.mxu0 0.0
    %836 = vmatpush.xpose.msra.mxu0 0.0
    %837 = vmatpush.xpose.msra.mxu0 0.0
    %838 = vmatpush.xpose.msra.mxu0 0.0
    %839 = vmatpush.xpose.msra.mxu0 %v729
    %840 = vmatpush.xpose.msra.mxu0 %v726
    %841 = vmatpush.xpose.msra.mxu0 %v723
    %842 = vmatpush.xpose.msra.mxu0 %v720
    %843 = vmatmul.f32.gmra.mxu0 %v825
    %v844 = vpop.f32.mrf.mxu0
    %v845 = vadd.f32 %v700, %v844
    %846 = vdwg.mxu0
    %847 = vst.msk [vmem:[%s11 + $0x20] sm:$0xff] %vm460, %v845
    %v849 = vsel %vm460, %v845, 0
    %851 = vmatpush.xpose.msra.mxu0 0.0
    %852 = vmatpush.xpose.msra.mxu0 0.0
    %853 = vmatpush.xpose.msra.mxu0 0.0
    %854 = vmatpush.xpose.msra.mxu0 0.0
    %855 = vmatpush.xpose.msra.mxu0 0.0
    %856 = vmatpush.xpose.msra.mxu0 0.0
    %857 = vmatpush.xpose.msra.mxu0 0.0
    %858 = vmatpush.xpose.msra.mxu0 0.0
    %859 = vmatpush.xpose.msra.mxu0 0.0
    %860 = vmatpush.xpose.msra.mxu0 0.0
    %861 = vmatpush.xpose.msra.mxu0 0.0
    %862 = vmatpush.xpose.msra.mxu0 0.0
    %863 = vmatpush.xpose.msra.mxu0 %v729
    %864 = vmatpush.xpose.msra.mxu0 %v726
    %865 = vmatpush.xpose.msra.mxu0 %v723
    %866 = vmatpush.xpose.msra.mxu0 %v720
    %867 = vmatmul.f32.gmra.mxu0 %v849
    %v868 = vpop.f32.mrf.mxu0
    %v869 = vadd.f32 %v703, %v868
    %870 = vdwg.mxu0
    %871 = vst.msk [vmem:[%s11 + $0x28] sm:$0xff] %vm460, %v869
    %v873 = vsel %vm460, %v869, 0
    %875 = vmatpush.xpose.msra.mxu0 0.0
    %876 = vmatpush.xpose.msra.mxu0 0.0
    %877 = vmatpush.xpose.msra.mxu0 0.0
    %878 = vmatpush.xpose.msra.mxu0 0.0
    %879 = vmatpush.xpose.msra.mxu0 0.0
    %880 = vmatpush.xpose.msra.mxu0 0.0
    %881 = vmatpush.xpose.msra.mxu0 0.0
    %882 = vmatpush.xpose.msra.mxu0 0.0
    %883 = vmatpush.xpose.msra.mxu0 0.0
    %884 = vmatpush.xpose.msra.mxu0 0.0
    %885 = vmatpush.xpose.msra.mxu0 0.0
    %886 = vmatpush.xpose.msra.mxu0 0.0
    %887 = vmatpush.xpose.msra.mxu0 %v729
    %888 = vmatpush.xpose.msra.mxu0 %v726
    %889 = vmatpush.xpose.msra.mxu0 %v723
    %890 = vmatpush.xpose.msra.mxu0 %v720
    %891 = vmatmul.f32.gmra.mxu0 %v873
    %v892 = vpop.f32.mrf.mxu0
    %v893 = vadd.f32 %v706, %v892
    %894 = vdwg.mxu0
    %895 = vst.msk [vmem:[%s11 + $0x30] sm:$0xff] %vm460, %v893
    %v897 = vsel %vm460, %v893, 0
    %899 = vmatpush.xpose.msra.mxu0 0.0
    %900 = vmatpush.xpose.msra.mxu0 0.0
    %901 = vmatpush.xpose.msra.mxu0 0.0
    %902 = vmatpush.xpose.msra.mxu0 0.0
    %903 = vmatpush.xpose.msra.mxu0 0.0
    %904 = vmatpush.xpose.msra.mxu0 0.0
    %905 = vmatpush.xpose.msra.mxu0 0.0
    %906 = vmatpush.xpose.msra.mxu0 0.0
    %907 = vmatpush.xpose.msra.mxu0 0.0
    %908 = vmatpush.xpose.msra.mxu0 0.0
    %909 = vmatpush.xpose.msra.mxu0 0.0
    %910 = vmatpush.xpose.msra.mxu0 0.0
    %911 = vmatpush.xpose.msra.mxu0 %v729
    %912 = vmatpush.xpose.msra.mxu0 %v726
    %913 = vmatpush.xpose.msra.mxu0 %v723
    %914 = vmatpush.xpose.msra.mxu0 %v720
    %915 = vmatmul.f32.gmra.mxu0 %v897
    %v916 = vpop.f32.mrf.mxu0
    %v917 = vadd.f32 %v709, %v916
    %918 = vdwg.mxu0
    %919 = vst.msk [vmem:[%s11 + $0x38] sm:$0xff] %vm460, %v917
    %920 = vst.msk [vmem:[#allocation2] sm:$0xff] %vm460, %v917
    // Predicated region
    $region58: #{ssm_black_forward.1} parent=1 // pred_check
      _
    $region59: #{ssm_black_forward.1} parent=1 // pred_check_branch
      %922 = sbr.rel (0) target = $region61
    $region60: #{ssm_black_forward.1} parent=1 // pred_region
      _
    $region61: #{ssm_black_forward.1} parent=1 // pred_fallthru
      _
    // Predicated region
    $region62: #{ssm_black_forward.1} parent=1 // pred_check
      _
    $region63: #{ssm_black_forward.1} parent=1 // pred_check_branch
      %924 = sbr.rel (0) target = $region65
    $region64: #{ssm_black_forward.1} parent=1 // pred_region
      _
    $region65: #{ssm_black_forward.1} parent=1 // pred_fallthru
      _
    %925 = vsyncpa [#allocation5], 1
    %926 = vsyncpa [#allocation7], 1

</llo_original>
